<compile_context>
chip_gen: v7x
topology: tpu7x:2x2x1
jax: 0.10.0
libtpu: 0.0.40
codegen_flags: <defaults>
</compile_context>

<pallas_src>
import functools
import math

import jax
import jax.numpy as jnp
from jax.experimental import pallas as pl
from jax.experimental.pallas import tpu as pltpu


# ------------------------- fused multi-layer LSTM kernel ------------------------- #
def _fused_lstm_kernel(x_ref, h0_ref, c0_ref, *refs, num_layers, T, N, H):
    """Whole LSTM in one kernel.
    x_ref:  (T*N, D_in) time-major rows (row = t*N + n), f32
    h0/c0:  (num_layers, N, H) f32
    refs:   [wih_0(bf16 D,4H), whh_0(bf16 H,4H), b_0(f32 1,4H), wih_1, whh_1, b_1, ...,
             y_ref(T*N,H), hn_ref(L,N,H), cn_ref(L,N,H)]
    Gate order matches PyTorch: i, f, g, o. Bias is (b_ih + b_hh)."""
    w_refs = refs[:3 * num_layers]
    y_ref, hn_ref, cn_ref = refs[3 * num_layers:]

    layer_in = x_ref[...]                                   # (T*N, D_in) f32
    for l in range(num_layers):
        wih_ref, whh_ref, b_ref = w_refs[3 * l: 3 * l + 3]
        wih = wih_ref[...]                                  # bf16 (D, 4H), resident in VMEM
        whh = whh_ref[...]                                  # bf16 (H, 4H)
        b = b_ref[...]                                      # f32  (1, 4H)

        # Hoisted input projection: one MXU matmul for all timesteps of this layer.
        gx = jnp.dot(layer_in.astype(jnp.bfloat16), wih,
                     preferred_element_type=jnp.float32) + b          # (T*N, 4H) f32

        h = h0_ref[l]                                       # (N, H) f32
        c = c0_ref[l]
        outs = []
        # TODO(synk): for long sequences switch this static unroll to pl.loop with a
        # time-major VMEM scratch; T is small/static here so unrolling gives the
        # scheduler full visibility.
        for t in range(T):
            gates = gx[t * N:(t + 1) * N, :] + jnp.dot(
                h.astype(jnp.bfloat16), whh, preferred_element_type=jnp.float32)
            # NOTE: gate slices are lane-aligned whenever H is a multiple of 128.
            # sigmoid(x) = 0.5*(1 + tanh(0.5*x)) -> single EUP op per gate.
            i = 0.5 * (1.0 + jnp.tanh(0.5 * gates[:, 0 * H:1 * H]))
            f = 0.5 * (1.0 + jnp.tanh(0.5 * gates[:, 1 * H:2 * H]))
            g = jnp.tanh(gates[:, 2 * H:3 * H])
            o = 0.5 * (1.0 + jnp.tanh(0.5 * gates[:, 3 * H:4 * H]))
            c = f * c + i * g
            h = o * jnp.tanh(c)
            outs.append(h)

        hn_ref[l] = h
        cn_ref[l] = c
        # TODO(synk): nn.LSTM inter-layer dropout(0.2) is a train-mode op; eval forward omits it.
        layer_in = outs[0] if T == 1 else jnp.concatenate(outs, axis=0)   # (T*N, H)

    y_ref[...] = layer_in                                   # final-layer outputs, time-major


def fused_lstm(x_flat, h0, c0, layer_params, *, T, N, H):
    num_layers = len(layer_params)
    flat_w = []
    for p in layer_params:
        flat_w.extend(p)
    kernel = functools.partial(_fused_lstm_kernel, num_layers=num_layers, T=T, N=N, H=H)
    vspec = pl.BlockSpec(memory_space=pltpu.MemorySpace.VMEM)
    return pl.pallas_call(
        kernel,
        out_shape=(jax.ShapeDtypeStruct((T * N, H), jnp.float32),
                   jax.ShapeDtypeStruct((num_layers, N, H), jnp.float32),
                   jax.ShapeDtypeStruct((num_layers, N, H), jnp.float32)),
        in_specs=[vspec] * (3 + 3 * num_layers),
        out_specs=(vspec, vspec, vspec),
    )(x_flat, h0, c0, *flat_w)


# ----------------------- MHA attention-weights kernel (one call) ----------------------- #
def _attn_weights_kernel(y_ref, enc_ref, bias_ref, wq_ref, wk_ref, bq_ref, bk_ref, out_ref,
                         *, N, T, L, num_heads):
    """Head-averaged softmax(q k^T / sqrt(hd) + key_padding_bias) for the whole batch.
    y:(N*T,H) batch-major rows, enc:(N*L,H), bias:(N,L) additive mask,
    wq/wk:(nh,H,hd) bf16 (scale folded into wq), bq/bk:(nh,1,hd) f32 -> out:(N*T,L)."""
    y_bf = y_ref[...].astype(jnp.bfloat16)                  # (N*T, H)
    enc_bf = enc_ref[...].astype(jnp.bfloat16)              # (N*L, H)
    inv_heads = 1.0 / num_heads

    # Per-head projections for ALL rows at once; weights are pre-split per head so no
    # in-kernel lane slicing of q/k is needed (static first-axis weight index only).
    q_heads, k_heads = [], []
    for h in range(num_heads):
        qh = jnp.dot(y_bf, wq_ref[h], preferred_element_type=jnp.float32) + bq_ref[h]    # (N*T, hd)
        kh = jnp.dot(enc_bf, wk_ref[h], preferred_element_type=jnp.float32) + bk_ref[h]  # (N*L, hd)
        q_heads.append(qh)
        k_heads.append(kh)

    for n in range(N):                                      # static, small batch
        bias_n = bias_ref[n:n + 1, :]                       # (1, L)
        acc = jnp.zeros((T, L), jnp.float32)
        for h in range(num_heads):
            qn = q_heads[h][n * T:(n + 1) * T, :]           # (T, hd) static row slice
            kn = k_heads[h][n * L:(n + 1) * L, :]           # (L, hd)
            s = jax.lax.dot_general(qn, kn, (((1,), (1,)), ((), ())),
                                    preferred_element_type=jnp.float32)  # (T, L)
            s = s + bias_n
            s = s - jnp.max(s, axis=-1, keepdims=True)
            e = jnp.exp(s)
            acc = acc + e * pl.reciprocal(jnp.sum(e, axis=-1, keepdims=True), approx=True)
        out_ref[n * T:(n + 1) * T, :] = (acc * inv_heads).astype(out_ref.dtype)
    # NOTE: fully-masked rows give a near-uniform distribution here; PyTorch returns NaN.


def attn_weights(y_bm, enc_flat, mask_bias, wq_split, wk_split, bq_split, bk_split,
                 *, N, T, L, num_heads):
    kernel = functools.partial(_attn_weights_kernel, N=N, T=T, L=L, num_heads=num_heads)
    vspec = pl.BlockSpec(memory_space=pltpu.MemorySpace.VMEM)
    return pl.pallas_call(
        kernel,
        out_shape=jax.ShapeDtypeStruct((N * T, L), jnp.float32),
        in_specs=[vspec] * 7,
        out_specs=vspec,
    )(y_bm, enc_flat, mask_bias, wq_split, wk_split, bq_split, bk_split)


# --------------------------------------- Decoder --------------------------------------- #
class DecoderPallas:
    def __init__(self, input_dim, hidden_dim, num_layers, num_heads, key):
        assert hidden_dim % num_heads == 0
        self.input_dim = input_dim
        self.hidden_dim = hidden_dim
        self.num_layers = num_layers
        self.num_heads = num_heads
        self.head_dim = hidden_dim // num_heads

        H = hidden_dim
        stdv = 1.0 / math.sqrt(H)
        keys = jax.random.split(key, num_layers * 4 + 1)

        # LSTM params: transposed weights in bf16 (MXU operands), combined bias in f32.
        self.lstm_params = []
        for l in range(num_layers):
            d_in = input_dim if l == 0 else H
            k0, k1, k2, k3 = keys[4 * l: 4 * l + 4]
            w_ih = jax.random.uniform(k0, (4 * H, d_in), jnp.float32, -stdv, stdv)
            w_hh = jax.random.uniform(k1, (4 * H, H), jnp.float32, -stdv, stdv)
            b_ih = jax.random.uniform(k2, (4 * H,), jnp.float32, -stdv, stdv)
            b_hh = jax.random.uniform(k3, (4 * H,), jnp.float32, -stdv, stdv)
            self.lstm_params.append(
                (w_ih.T.astype(jnp.bfloat16),
                 w_hh.T.astype(jnp.bfloat16),
                 (b_ih + b_hh).reshape(1, 4 * H).astype(jnp.float32)))

        # MultiheadAttention in_proj (xavier-uniform weight, zero bias); only q/k matter
        # for the returned attention weights. Pre-split per head, fold 1/sqrt(hd) into Wq/bq.
        kin = keys[-1]
        bound = math.sqrt(6.0 / (H + 3 * H))
        in_proj_w = jax.random.uniform(kin, (3 * H, H), jnp.float32, -bound, bound)
        scale = 1.0 / math.sqrt(self.head_dim)
        wq_t = in_proj_w[:H].T * scale                       # (H_in, H_out), scale folded
        wk_t = in_proj_w[H:2 * H].T
        nh, hd = num_heads, self.head_dim
        self.wq_split = wq_t.reshape(H, nh, hd).transpose(1, 0, 2).astype(jnp.bfloat16)  # (nh,H,hd)
        self.wk_split = wk_t.reshape(H, nh, hd).transpose(1, 0, 2).astype(jnp.bfloat16)
        bq = jnp.zeros((H,), jnp.float32) * scale
        bk = jnp.zeros((H,), jnp.float32)
        self.bq_split = bq.reshape(nh, 1, hd)
        self.bk_split = bk.reshape(nh, 1, hd)

    def __call__(self, x, enc_outs, h0, c0, indices_to_ignore):
        N, T, D = x.shape
        _, L, _ = enc_outs.shape
        H = self.hidden_dim

        # ---- fused multi-layer LSTM (single pallas_call) ----
        x_tm = jnp.transpose(x, (1, 0, 2)).reshape(T * N, D)      # time-major rows
        y_tm, hn, cn = fused_lstm(x_tm, h0, c0, self.lstm_params, T=T, N=N, H=H)

        # time-major -> batch-major rows for attention (trivial when T == 1)
        y_bm = y_tm.reshape(T, N, H).transpose(1, 0, 2).reshape(N * T, H)

        # ---- key_padding_mask -> additive bias (N, L) ----
        if indices_to_ignore is not None:
            onehot = jax.nn.one_hot(indices_to_ignore, L, dtype=jnp.float32)   # (N, K, L)
            masked = onehot.sum(axis=1) > 0                                    # (N, L) bool
            mask_bias = jnp.where(masked, -1e30, 0.0).astype(jnp.float32)
        else:
            mask_bias = jnp.zeros((N, L), jnp.float32)

        # ---- head-averaged attention weights (single pallas_call over whole batch) ----
        # TODO(synk): attn dropout(0.1) is train-mode only; eval forward omits it.
        enc_flat = enc_outs.reshape(N * L, H)
        aw = attn_weights(y_bm, enc_flat, mask_bias,
                          self.wq_split, self.wk_split, self.bq_split, self.bk_split,
                          N=N, T=T, L=L, num_heads=self.num_heads)             # (N*T, L)
        aw = aw.reshape(N, T, L)
        if T == 1:                                  # torch .squeeze(1) only squeezes size-1 dims
            aw = aw[:, 0, :]
        return (hn, cn), aw


# ------------------------------------------ main ------------------------------------------ #
if __name__ == "__main__":
    N, T, D_IN, H, NUM_LAYERS, NUM_HEADS, L = 2, 1, 16, 32, 2, 4, 8

    key = jax.random.PRNGKey(0)
    k1, k2, k3, k4 = jax.random.split(key, 4)
    x = jax.random.normal(k1, (N, T, D_IN), jnp.float32)
    enc_outs = jax.random.normal(k2, (N, L, H), jnp.float32)
    h0 = jax.random.normal(k3, (NUM_LAYERS, N, H), jnp.float32)
    c0 = jax.random.normal(k4, (NUM_LAYERS, N, H), jnp.float32)
    indices_to_ignore = jnp.array([[1, 3], [0, 5]], dtype=jnp.int32)  # (N, 2)

    decoder = DecoderPallas(D_IN, H, NUM_LAYERS, NUM_HEADS, jax.random.PRNGKey(42))
    (hn, cn), aw = decoder(x, enc_outs, h0, c0, indices_to_ignore)
    jax.block_until_ready((hn, cn, aw))

    assert hn.shape == (NUM_LAYERS, N, H)
    assert cn.shape == (NUM_LAYERS, N, H)
    assert aw.shape == (N, L)
    # masked keys must have ~zero attention weight
    assert float(aw[0, 1]) < 1e-9 and float(aw[1, 5]) < 1e-9
    # rows sum to ~1 (softmax; approx-reciprocal + bf16 MXU operands -> loose tolerance)
    assert bool(jnp.allclose(aw.sum(-1), 1.0, atol=2e-2))

    print("KERNEL_OK")
</pallas_src>

<mosaic_0001>
module attributes {stable_mosaic.version = 11 : i64} {
  func.func @_fused_lstm_kernel(%arg0: memref<2x16xf32, #tpu.memory_space<vmem>>, %arg1: memref<2x2x32xf32, #tpu.memory_space<vmem>>, %arg2: memref<2x2x32xf32, #tpu.memory_space<vmem>>, %arg3: memref<16x128xbf16, #tpu.memory_space<vmem>>, %arg4: memref<32x128xbf16, #tpu.memory_space<vmem>>, %arg5: memref<1x128xf32, #tpu.memory_space<vmem>>, %arg6: memref<32x128xbf16, #tpu.memory_space<vmem>>, %arg7: memref<32x128xbf16, #tpu.memory_space<vmem>>, %arg8: memref<1x128xf32, #tpu.memory_space<vmem>>, %arg9: memref<2x32xf32, #tpu.memory_space<vmem>>, %arg10: memref<2x2x32xf32, #tpu.memory_space<vmem>>, %arg11: memref<2x2x32xf32, #tpu.memory_space<vmem>>) attributes {dimension_semantics = [], scalar_prefetch = 0 : i64, scratch_operands = 0 : i64, tpu.core_type = #tpu.core_type<tc>} {
    %c0 = arith.constant 0 : index
    %c0_0 = arith.constant 0 : index
    %0 = vector.load %arg0[%c0, %c0_0] : memref<2x16xf32, #tpu.memory_space<vmem>>, vector<2x16xf32>
    %c0_1 = arith.constant 0 : index
    %c0_2 = arith.constant 0 : index
    %1 = vector.load %arg3[%c0_1, %c0_2] : memref<16x128xbf16, #tpu.memory_space<vmem>>, vector<16x128xbf16>
    %c0_3 = arith.constant 0 : index
    %c0_4 = arith.constant 0 : index
    %2 = vector.load %arg4[%c0_3, %c0_4] : memref<32x128xbf16, #tpu.memory_space<vmem>>, vector<32x128xbf16>
    %c0_5 = arith.constant 0 : index
    %c0_6 = arith.constant 0 : index
    %3 = vector.load %arg5[%c0_5, %c0_6] : memref<1x128xf32, #tpu.memory_space<vmem>>, vector<1x128xf32>
    %4 = arith.truncf %0 : vector<2x16xf32> to vector<2x16xbf16>
    %cst = arith.constant dense<0.000000e+00> : vector<2x128xf32>
    %5 = tpu.matmul %4, %1, %cst {dimension_numbers = #tpu.dot_dimension_numbers<[1], [0], [0], [1], [0, 0, 1, 1], [], []>} : vector<2x16xbf16>, vector<16x128xbf16>, vector<2x128xf32> -> vector<2x128xf32>
    %6 = vector.broadcast %3 : vector<1x128xf32> to vector<2x128xf32>
    %7 = arith.addf %5, %6 : vector<2x128xf32>
    %c0_7 = arith.constant 0 : index
    %c0_8 = arith.constant 0 : index
    %c0_9 = arith.constant 0 : index
    %8 = vector.load %arg1[%c0_7, %c0_8, %c0_9] : memref<2x2x32xf32, #tpu.memory_space<vmem>>, vector<1x2x32xf32>
    %9 = vector.shape_cast %8 : vector<1x2x32xf32> to vector<2x32xf32>
    %c0_10 = arith.constant 0 : index
    %c0_11 = arith.constant 0 : index
    %c0_12 = arith.constant 0 : index
    %10 = vector.load %arg2[%c0_10, %c0_11, %c0_12] : memref<2x2x32xf32, #tpu.memory_space<vmem>>, vector<1x2x32xf32>
    %11 = vector.shape_cast %10 : vector<1x2x32xf32> to vector<2x32xf32>
    %12 = arith.truncf %9 : vector<2x32xf32> to vector<2x32xbf16>
    %cst_13 = arith.constant dense<0.000000e+00> : vector<2x128xf32>
    %13 = tpu.matmul %12, %2, %cst_13 {dimension_numbers = #tpu.dot_dimension_numbers<[1], [0], [0], [1], [0, 0, 1, 1], [], []>} : vector<2x32xbf16>, vector<32x128xbf16>, vector<2x128xf32> -> vector<2x128xf32>
    %14 = arith.addf %7, %13 : vector<2x128xf32>
    %15 = vector.extract_strided_slice %14 {offsets = [0, 0], sizes = [2, 32], strides = [1, 1]} : vector<2x128xf32> to vector<2x32xf32>
    %cst_14 = arith.constant 5.000000e-01 : f32
    %16 = vector.broadcast %cst_14 : f32 to vector<2x32xf32>
    %17 = arith.mulf %16, %15 : vector<2x32xf32>
    %18 = math.tanh %17 : vector<2x32xf32>
    %cst_15 = arith.constant 1.000000e+00 : f32
    %19 = vector.broadcast %cst_15 : f32 to vector<2x32xf32>
    %20 = arith.addf %19, %18 : vector<2x32xf32>
    %cst_16 = arith.constant 5.000000e-01 : f32
    %21 = vector.broadcast %cst_16 : f32 to vector<2x32xf32>
    %22 = arith.mulf %21, %20 : vector<2x32xf32>
    %23 = vector.extract_strided_slice %14 {offsets = [0, 32], sizes = [2, 32], strides = [1, 1]} : vector<2x128xf32> to vector<2x32xf32>
    %cst_17 = arith.constant 5.000000e-01 : f32
    %24 = vector.broadcast %cst_17 : f32 to vector<2x32xf32>
    %25 = arith.mulf %24, %23 : vector<2x32xf32>
    %26 = math.tanh %25 : vector<2x32xf32>
    %cst_18 = arith.constant 1.000000e+00 : f32
    %27 = vector.broadcast %cst_18 : f32 to vector<2x32xf32>
    %28 = arith.addf %27, %26 : vector<2x32xf32>
    %cst_19 = arith.constant 5.000000e-01 : f32
    %29 = vector.broadcast %cst_19 : f32 to vector<2x32xf32>
    %30 = arith.mulf %29, %28 : vector<2x32xf32>
    %31 = vector.extract_strided_slice %14 {offsets = [0, 64], sizes = [2, 32], strides = [1, 1]} : vector<2x128xf32> to vector<2x32xf32>
    %32 = math.tanh %31 : vector<2x32xf32>
    %33 = vector.extract_strided_slice %14 {offsets = [0, 96], sizes = [2, 32], strides = [1, 1]} : vector<2x128xf32> to vector<2x32xf32>
    %cst_20 = arith.constant 5.000000e-01 : f32
    %34 = vector.broadcast %cst_20 : f32 to vector<2x32xf32>
    %35 = arith.mulf %34, %33 : vector<2x32xf32>
    %36 = math.tanh %35 : vector<2x32xf32>
    %cst_21 = arith.constant 1.000000e+00 : f32
    %37 = vector.broadcast %cst_21 : f32 to vector<2x32xf32>
    %38 = arith.addf %37, %36 : vector<2x32xf32>
    %cst_22 = arith.constant 5.000000e-01 : f32
    %39 = vector.broadcast %cst_22 : f32 to vector<2x32xf32>
    %40 = arith.mulf %39, %38 : vector<2x32xf32>
    %41 = arith.mulf %30, %11 : vector<2x32xf32>
    %42 = arith.mulf %22, %32 : vector<2x32xf32>
    %43 = arith.addf %41, %42 : vector<2x32xf32>
    %44 = math.tanh %43 : vector<2x32xf32>
    %45 = arith.mulf %40, %44 : vector<2x32xf32>
    %c0_23 = arith.constant 0 : index
    %c0_24 = arith.constant 0 : index
    %c0_25 = arith.constant 0 : index
    %46 = vector.load %arg10[%c0_23, %c0_24, %c0_25] : memref<2x2x32xf32, #tpu.memory_space<vmem>>, vector<1x2x32xf32>
    %47 = vector.shape_cast %46 : vector<1x2x32xf32> to vector<2x32xf32>
    %48 = vector.shape_cast %45 : vector<2x32xf32> to vector<1x2x32xf32>
    tpu.vector_store %arg10[%c0_23, %c0_24, %c0_25], %48 {strides = array<i32>} : memref<2x2x32xf32, #tpu.memory_space<vmem>>, vector<1x2x32xf32>,
    %c0_26 = arith.constant 0 : index
    %c0_27 = arith.constant 0 : index
    %c0_28 = arith.constant 0 : index
    %49 = vector.load %arg11[%c0_26, %c0_27, %c0_28] : memref<2x2x32xf32, #tpu.memory_space<vmem>>, vector<1x2x32xf32>
    %50 = vector.shape_cast %49 : vector<1x2x32xf32> to vector<2x32xf32>
    %51 = vector.shape_cast %43 : vector<2x32xf32> to vector<1x2x32xf32>
    tpu.vector_store %arg11[%c0_26, %c0_27, %c0_28], %51 {strides = array<i32>} : memref<2x2x32xf32, #tpu.memory_space<vmem>>, vector<1x2x32xf32>,
    %c0_29 = arith.constant 0 : index
    %c0_30 = arith.constant 0 : index
    %52 = vector.load %arg6[%c0_29, %c0_30] : memref<32x128xbf16, #tpu.memory_space<vmem>>, vector<32x128xbf16>
    %c0_31 = arith.constant 0 : index
    %c0_32 = arith.constant 0 : index
    %53 = vector.load %arg7[%c0_31, %c0_32] : memref<32x128xbf16, #tpu.memory_space<vmem>>, vector<32x128xbf16>
    %c0_33 = arith.constant 0 : index
    %c0_34 = arith.constant 0 : index
    %54 = vector.load %arg8[%c0_33, %c0_34] : memref<1x128xf32, #tpu.memory_space<vmem>>, vector<1x128xf32>
    %55 = arith.truncf %45 : vector<2x32xf32> to vector<2x32xbf16>
    %cst_35 = arith.constant dense<0.000000e+00> : vector<2x128xf32>
    %56 = tpu.matmul %55, %52, %cst_35 {dimension_numbers = #tpu.dot_dimension_numbers<[1], [0], [0], [1], [0, 0, 1, 1], [], []>} : vector<2x32xbf16>, vector<32x128xbf16>, vector<2x128xf32> -> vector<2x128xf32>
    %57 = vector.broadcast %54 : vector<1x128xf32> to vector<2x128xf32>
    %58 = arith.addf %56, %57 : vector<2x128xf32>
    %c1 = arith.constant 1 : index
    %c0_36 = arith.constant 0 : index
    %c0_37 = arith.constant 0 : index
    %59 = vector.load %arg1[%c1, %c0_36, %c0_37] : memref<2x2x32xf32, #tpu.memory_space<vmem>>, vector<1x2x32xf32>
    %60 = vector.shape_cast %59 : vector<1x2x32xf32> to vector<2x32xf32>
    %c1_38 = arith.constant 1 : index
    %c0_39 = arith.constant 0 : index
    %c0_40 = arith.constant 0 : index
    %61 = vector.load %arg2[%c1_38, %c0_39, %c0_40] : memref<2x2x32xf32, #tpu.memory_space<vmem>>, vector<1x2x32xf32>
    %62 = vector.shape_cast %61 : vector<1x2x32xf32> to vector<2x32xf32>
    %63 = arith.truncf %60 : vector<2x32xf32> to vector<2x32xbf16>
    %cst_41 = arith.constant dense<0.000000e+00> : vector<2x128xf32>
    %64 = tpu.matmul %63, %53, %cst_41 {dimension_numbers = #tpu.dot_dimension_numbers<[1], [0], [0], [1], [0, 0, 1, 1], [], []>} : vector<2x32xbf16>, vector<32x128xbf16>, vector<2x128xf32> -> vector<2x128xf32>
    %65 = arith.addf %58, %64 : vector<2x128xf32>
    %66 = vector.extract_strided_slice %65 {offsets = [0, 0], sizes = [2, 32], strides = [1, 1]} : vector<2x128xf32> to vector<2x32xf32>
    %cst_42 = arith.constant 5.000000e-01 : f32
    %67 = vector.broadcast %cst_42 : f32 to vector<2x32xf32>
    %68 = arith.mulf %67, %66 : vector<2x32xf32>
    %69 = math.tanh %68 : vector<2x32xf32>
    %cst_43 = arith.constant 1.000000e+00 : f32
    %70 = vector.broadcast %cst_43 : f32 to vector<2x32xf32>
    %71 = arith.addf %70, %69 : vector<2x32xf32>
    %cst_44 = arith.constant 5.000000e-01 : f32
    %72 = vector.broadcast %cst_44 : f32 to vector<2x32xf32>
    %73 = arith.mulf %72, %71 : vector<2x32xf32>
    %74 = vector.extract_strided_slice %65 {offsets = [0, 32], sizes = [2, 32], strides = [1, 1]} : vector<2x128xf32> to vector<2x32xf32>
    %cst_45 = arith.constant 5.000000e-01 : f32
    %75 = vector.broadcast %cst_45 : f32 to vector<2x32xf32>
    %76 = arith.mulf %75, %74 : vector<2x32xf32>
    %77 = math.tanh %76 : vector<2x32xf32>
    %cst_46 = arith.constant 1.000000e+00 : f32
    %78 = vector.broadcast %cst_46 : f32 to vector<2x32xf32>
    %79 = arith.addf %78, %77 : vector<2x32xf32>
    %cst_47 = arith.constant 5.000000e-01 : f32
    %80 = vector.broadcast %cst_47 : f32 to vector<2x32xf32>
    %81 = arith.mulf %80, %79 : vector<2x32xf32>
    %82 = vector.extract_strided_slice %65 {offsets = [0, 64], sizes = [2, 32], strides = [1, 1]} : vector<2x128xf32> to vector<2x32xf32>
    %83 = math.tanh %82 : vector<2x32xf32>
    %84 = vector.extract_strided_slice %65 {offsets = [0, 96], sizes = [2, 32], strides = [1, 1]} : vector<2x128xf32> to vector<2x32xf32>
    %cst_48 = arith.constant 5.000000e-01 : f32
    %85 = vector.broadcast %cst_48 : f32 to vector<2x32xf32>
    %86 = arith.mulf %85, %84 : vector<2x32xf32>
    %87 = math.tanh %86 : vector<2x32xf32>
    %cst_49 = arith.constant 1.000000e+00 : f32
    %88 = vector.broadcast %cst_49 : f32 to vector<2x32xf32>
    %89 = arith.addf %88, %87 : vector<2x32xf32>
    %cst_50 = arith.constant 5.000000e-01 : f32
    %90 = vector.broadcast %cst_50 : f32 to vector<2x32xf32>
    %91 = arith.mulf %90, %89 : vector<2x32xf32>
    %92 = arith.mulf %81, %62 : vector<2x32xf32>
    %93 = arith.mulf %73, %83 : vector<2x32xf32>
    %94 = arith.addf %92, %93 : vector<2x32xf32>
    %95 = math.tanh %94 : vector<2x32xf32>
    %96 = arith.mulf %91, %95 : vector<2x32xf32>
    %c1_51 = arith.constant 1 : index
    %c0_52 = arith.constant 0 : index
    %c0_53 = arith.constant 0 : index
    %97 = vector.load %arg10[%c1_51, %c0_52, %c0_53] : memref<2x2x32xf32, #tpu.memory_space<vmem>>, vector<1x2x32xf32>
    %98 = vector.shape_cast %97 : vector<1x2x32xf32> to vector<2x32xf32>
    %99 = vector.shape_cast %96 : vector<2x32xf32> to vector<1x2x32xf32>
    tpu.vector_store %arg10[%c1_51, %c0_52, %c0_53], %99 {strides = array<i32>} : memref<2x2x32xf32, #tpu.memory_space<vmem>>, vector<1x2x32xf32>,
    %c1_54 = arith.constant 1 : index
    %c0_55 = arith.constant 0 : index
    %c0_56 = arith.constant 0 : index
    %100 = vector.load %arg11[%c1_54, %c0_55, %c0_56] : memref<2x2x32xf32, #tpu.memory_space<vmem>>, vector<1x2x32xf32>
    %101 = vector.shape_cast %100 : vector<1x2x32xf32> to vector<2x32xf32>
    %102 = vector.shape_cast %94 : vector<2x32xf32> to vector<1x2x32xf32>
    tpu.vector_store %arg11[%c1_54, %c0_55, %c0_56], %102 {strides = array<i32>} : memref<2x2x32xf32, #tpu.memory_space<vmem>>, vector<1x2x32xf32>,
    %c0_57 = arith.constant 0 : index
    %c0_58 = arith.constant 0 : index
    %103 = vector.load %arg9[%c0_57, %c0_58] : memref<2x32xf32, #tpu.memory_space<vmem>>, vector<2x32xf32>
    tpu.vector_store %arg9[%c0_57, %c0_58], %96 {strides = array<i32>} : memref<2x32xf32, #tpu.memory_space<vmem>>, vector<2x32xf32>,
    return
  }
}

</mosaic_0001>

<llo_original>
// kernel: tpu_custom_call.1
$region0: #{tpu_custom_call.1}
  #allocation0 [shape = 'u32[]', space=smem, size = 0x4, offset = 0x4, fixed_abs, tag = 'smem constant byte address 0x4 - core index']
  #allocation1 [shape = 'u32[144,128]{1,0:T(1,128)}', space=vmem, size = 0x12000, scoped, tag = 'internal scratch']
  %s0 = inlined_call_operand.hbm [shape: f32[2,16], index: 0, kind: input, shape index: {}]
  %s1 = inlined_call_operand.hbm [shape: f32[2,2,32], index: 1, kind: input, shape index: {}]
  %s2 = inlined_call_operand.vmem [shape: f32[2,2,32], index: 2, kind: input, shape index: {}]
  %s3 = inlined_call_operand.hbm [shape: bf16[16,128], index: 3, kind: input, shape index: {}]
  %s4 = inlined_call_operand.hbm [shape: bf16[32,128], index: 4, kind: input, shape index: {}]
  %s5 = inlined_call_operand.vmem [shape: f32[1,128], index: 5, kind: input, shape index: {}]
  %s6 = inlined_call_operand.vmem [shape: bf16[32,128], index: 6, kind: input, shape index: {}]
  %s7 = inlined_call_operand.hbm [shape: bf16[32,128], index: 7, kind: input, shape index: {}]
  %s8 = inlined_call_operand.vmem [shape: f32[1,128], index: 8, kind: input, shape index: {}]
  %s9 = inlined_call_operand.hbm [shape: f32[2,32], index: 9, kind: output, shape index: {0}]
  %s10 = inlined_call_operand.hbm [shape: f32[2,2,32], index: 10, kind: output, shape index: {1}]
  %s11 = inlined_call_operand.hbm [shape: f32[2,2,32], index: 11, kind: output, shape index: {2}]
  %12 = xla_tuple %s9, %s10, %s11
  %s13 = sld [smem:[#allocation0]]
  $region82: #{tpu_custom_call.1} parent=0
    _
  %s15 = ssub.s32 1, %s13
  %s16 = scalar_select 0, %s15, %s13
  $region1: #{tpu_custom_call.1} parent=0
    #allocation2 [shape = 'u8[1024]{0}', space=vmem, size = 0x400, scoped, tag = 'input window, operand 0, single buffered']
    #allocation3 [shape = 's32[1]{0}', space=sflag, size = 0x4, scoped, tag = 'scoped memory for tpu_custom_call.1']
    #allocation4 [shape = 's32[1]{0}', space=sflag, size = 0x4, scoped, tag = 'scoped memory for tpu_custom_call.1']
    #allocation5 [shape = 'u8[2048]{0}', space=vmem, size = 0x800, scoped, tag = 'input window, operand 1, single buffered']
    #allocation6 [shape = 's32[1]{0}', space=sflag, size = 0x4, scoped, tag = 'scoped memory for tpu_custom_call.1']
    #allocation7 [shape = 'u8[4096]{0}', space=vmem, size = 0x1000, scoped, tag = 'input window, operand 3, single buffered']
    #allocation8 [shape = 'u8[8192]{0}', space=vmem, size = 0x2000, scoped, tag = 'input window, operand 4, single buffered']
    #allocation9 [shape = 's32[1]{0}', space=sflag, size = 0x4, scoped, tag = 'scoped memory for tpu_custom_call.1']
    #allocation10 [shape = 'u8[8192]{0}', space=vmem, size = 0x2000, scoped, tag = 'input window, operand 7, single buffered']
    #allocation11 [shape = 'u8[1024]{0}', space=vmem, size = 0x400, scoped, tag = 'output window, operand 0, single buffered']
    #allocation12 [shape = 'u8[2048]{0}', space=vmem, size = 0x800, scoped, tag = 'output window, operand 1, single buffered']
    #allocation13 [shape = 's32[1]{0}', space=sflag, size = 0x4, scoped, tag = 'scoped memory for tpu_custom_call.1']
    #allocation14 [shape = 'u8[2048]{0}', space=vmem, size = 0x800, scoped, tag = 'output window, operand 2, single buffered']
    %17 = vsyncpa [#allocation3], 0
    %18 = vsyncpa [#allocation6], 0
    %19 = vsyncpa [#allocation9], 0
    %20 = vsyncpa [#allocation4], 0
    %21 = vsyncpa [#allocation13], 0
    // Predicated region
    $region2: #{tpu_custom_call.1} parent=1 // pred_check
      _
    $region3: #{tpu_custom_call.1} parent=1 // pred_check_branch
      %23 = sbr.rel (0) target = $region5
    $region4: #{tpu_custom_call.1} parent=1 // pred_region
      %s25 = ssub.s32 32, 32
      %26 = vsyncadd [#allocation3], %s25
      %s28 = sshll.u32 [#allocation2], 4
      %s29 = int_to_ptr.vmem [resolvable:$true] %s28
      %31 = dma.hbm_to_vmem [thread:$0]  %s0, 32, %s29, [#allocation3]
    $region5: #{tpu_custom_call.1} parent=1 // pred_fallthru
      _
    // Predicated region
    $region6: #{tpu_custom_call.1} parent=1 // pred_check
      _
    $region7: #{tpu_custom_call.1} parent=1 // pred_check_branch
      %33 = sbr.rel (0) target = $region9
    $region8: #{tpu_custom_call.1} parent=1 // pred_region
      %s35 = ssub.s32 64, 64
      %36 = vsyncadd [#allocation6], %s35
      %s37 = sshll.u32 [#allocation5], 4
      %s38 = int_to_ptr.vmem [resolvable:$true] %s37
      %43 = dma.hbm_to_vmem [thread:$0]  %s1, 64, %s38, [#allocation6], 32, 32, 2
    $region9: #{tpu_custom_call.1} parent=1 // pred_fallthru
      _
    // Predicated region
    $region10: #{tpu_custom_call.1} parent=1 // pred_check
      _
    $region11: #{tpu_custom_call.1} parent=1 // pred_check_branch
      %45 = sbr.rel (0) target = $region13
    $region12: #{tpu_custom_call.1} parent=1 // pred_region
      _
    $region13: #{tpu_custom_call.1} parent=1 // pred_fallthru
      _
    // Predicated region
    $region14: #{tpu_custom_call.1} parent=1 // pred_check
      _
    $region15: #{tpu_custom_call.1} parent=1 // pred_check_branch
      %47 = sbr.rel (0) target = $region17
    $region16: #{tpu_custom_call.1} parent=1 // pred_region
      %s49 = ssub.s32 128, 128
      %50 = vsyncadd [#allocation6], %s49
      %s51 = sshll.u32 [#allocation7], 4
      %s52 = int_to_ptr.vmem [resolvable:$true] %s51
      %57 = dma.hbm_to_vmem [thread:$0]  %s3, 128, %s52, [#allocation6], 64, 64, 4
    $region17: #{tpu_custom_call.1} parent=1 // pred_fallthru
      _
    // Predicated region
    $region18: #{tpu_custom_call.1} parent=1 // pred_check
      _
    $region19: #{tpu_custom_call.1} parent=1 // pred_check_branch
      %59 = sbr.rel (0) target = $region21
    $region20: #{tpu_custom_call.1} parent=1 // pred_region
      %s61 = ssub.s32 256, 256
      %62 = vsyncadd [#allocation9], %s61
      %s63 = sshll.u32 [#allocation8], 4
      %s64 = int_to_ptr.vmem [resolvable:$true] %s63
      %69 = dma.hbm_to_vmem [thread:$0]  %s4, 256, %s64, [#allocation9], 64, 64, 4
    $region21: #{tpu_custom_call.1} parent=1 // pred_fallthru
      _
    // Predicated region
    $region22: #{tpu_custom_call.1} parent=1 // pred_check
      _
    $region23: #{tpu_custom_call.1} parent=1 // pred_check_branch
      %71 = sbr.rel (0) target = $region25
    $region24: #{tpu_custom_call.1} parent=1 // pred_region
      _
    $region25: #{tpu_custom_call.1} parent=1 // pred_fallthru
      _
    // Predicated region
    $region26: #{tpu_custom_call.1} parent=1 // pred_check
      _
    $region27: #{tpu_custom_call.1} parent=1 // pred_check_branch
      %73 = sbr.rel (0) target = $region29
    $region28: #{tpu_custom_call.1} parent=1 // pred_region
      _
    $region29: #{tpu_custom_call.1} parent=1 // pred_fallthru
      _
    // Predicated region
    $region30: #{tpu_custom_call.1} parent=1 // pred_check
      _
    $region31: #{tpu_custom_call.1} parent=1 // pred_check_branch
      %75 = sbr.rel (0) target = $region33
    $region32: #{tpu_custom_call.1} parent=1 // pred_region
      %s77 = ssub.s32 256, 256
      %78 = vsyncadd [#allocation9], %s77
      %s79 = sshll.u32 [#allocation10], 4
      %s80 = int_to_ptr.vmem [resolvable:$true] %s79
      %85 = dma.hbm_to_vmem [thread:$0]  %s7, 256, %s80, [#allocation9], 64, 64, 4
    $region33: #{tpu_custom_call.1} parent=1 // pred_fallthru
      _
    // Predicated region
    $region34: #{tpu_custom_call.1} parent=1 // pred_check
      _
    $region35: #{tpu_custom_call.1} parent=1 // pred_check_branch
      %87 = sbr.rel (0) target = $region37
    $region36: #{tpu_custom_call.1} parent=1 // pred_region
      _
    $region37: #{tpu_custom_call.1} parent=1 // pred_fallthru
      _
    // Predicated region
    $region38: #{tpu_custom_call.1} parent=1 // pred_check
      _
    $region39: #{tpu_custom_call.1} parent=1 // pred_check_branch
      %89 = sbr.rel (0) target = $region41
    $region40: #{tpu_custom_call.1} parent=1 // pred_region
      %90 = dma.done [#allocation3], 32
    $region41: #{tpu_custom_call.1} parent=1 // pred_fallthru
      _
    // Predicated region
    $region42: #{tpu_custom_call.1} parent=1 // pred_check
      _
    $region43: #{tpu_custom_call.1} parent=1 // pred_check_branch
      %92 = sbr.rel (0) target = $region45
    $region44: #{tpu_custom_call.1} parent=1 // pred_region
      %93 = dma.done [#allocation6], 64
    $region45: #{tpu_custom_call.1} parent=1 // pred_fallthru
      _
    // Predicated region
    $region46: #{tpu_custom_call.1} parent=1 // pred_check
      _
    $region47: #{tpu_custom_call.1} parent=1 // pred_check_branch
      %95 = sbr.rel (0) target = $region49
    $region48: #{tpu_custom_call.1} parent=1 // pred_region
      %96 = dma.done [#allocation6], 128
    $region49: #{tpu_custom_call.1} parent=1 // pred_fallthru
      _
    // Predicated region
    $region50: #{tpu_custom_call.1} parent=1 // pred_check
      _
    $region51: #{tpu_custom_call.1} parent=1 // pred_check_branch
      %98 = sbr.rel (0) target = $region53
    $region52: #{tpu_custom_call.1} parent=1 // pred_region
      %99 = dma.done [#allocation9], 256
    $region53: #{tpu_custom_call.1} parent=1 // pred_fallthru
      _
    // Predicated region
    $region54: #{tpu_custom_call.1} parent=1 // pred_check
      _
    $region55: #{tpu_custom_call.1} parent=1 // pred_check_branch
      %101 = sbr.rel (0) target = $region57
    $region56: #{tpu_custom_call.1} parent=1 // pred_region
      %102 = dma.done [#allocation9], 256
    $region57: #{tpu_custom_call.1} parent=1 // pred_fallthru
      _
    %v104 = vld [vmem:[#allocation2] sm:$0x3]
    %v105 = vld [vmem:[#allocation7] sm:$0xf]
    %v106 = vld [vmem:[#allocation7 + $0x4] sm:$0xf]
    %v107 = vld [vmem:[#allocation8] sm:$0xf]
    %v108 = vld [vmem:[#allocation8 + $0x4] sm:$0xf]
    %v109 = vld [vmem:[#allocation8 + $0x8] sm:$0xf]
    %v110 = vld [vmem:[#allocation8 + $0xc] sm:$0xf]
    %v111 = vld [vmem:[%s5] sm:$0x1]
    %v112 = vpack.c.bf16 %v104, %v104
    %v114 = vlaneseq
    %v115 = vshrl.u32 %v114, 7
    %v116 = vsub.s32 0, %v115
    %v117 = vrot.slane %v111, %v116
    %v121 = vunpack.c.l.b16 %v105
    %v122 = vunpack.c.l.b16 %v106
    %v123 = vpack.c.b16 %v122, %v121
    %vm125 = vcmask 130048
    %v127 = vsel %vm125, %v112, 0
    %129 = vmatprep.subr.bf16.mxu0 0
    %130 = vmatpush1.bf16.msra.mxu0 %v123
    %131 = vmatprep.subr.bf16.mxu0 0
    %132 = vmatpush1.bf16.msra.mxu0 0
    %133 = vmatprep.subr.bf16.mxu0 0
    %134 = vmatpush1.bf16.msra.mxu0 0
    %135 = vmatprep.subr.bf16.mxu0 0
    %136 = vmatpush1.bf16.msra.mxu0 0
    %137 = vmatprep.subr.bf16.mxu0 0
    %138 = vmatpush1.bf16.msra.mxu0 0
    %139 = vmatprep.subr.bf16.mxu0 0
    %140 = vmatpush1.bf16.msra.mxu0 0
    %141 = vmatprep.subr.bf16.mxu0 0
    %142 = vmatpush1.bf16.msra.mxu0 0
    %143 = vmatprep.subr.bf16.mxu0 0
    %144 = vmatpush1.bf16.msra.mxu0 0
    %145 = vmatprep.subr.bf16.mxu0 0
    %146 = vmatpush1.bf16.msra.mxu0 0
    %147 = vmatprep.subr.bf16.mxu0 0
    %148 = vmatpush1.bf16.msra.mxu0 0
    %149 = vmatprep.subr.bf16.mxu0 0
    %150 = vmatpush1.bf16.msra.mxu0 0
    %151 = vmatprep.subr.bf16.mxu0 0
    %152 = vmatpush1.bf16.msra.mxu0 0
    %153 = vmatprep.subr.bf16.mxu0 0
    %154 = vmatpush1.bf16.msra.mxu0 0
    %155 = vmatprep.subr.bf16.mxu0 0
    %156 = vmatpush1.bf16.msra.mxu0 0
    %157 = vmatprep.subr.bf16.mxu0 0
    %158 = vmatpush1.bf16.msra.mxu0 0
    %159 = vmatprep.subr.bf16.mxu0 0
    %160 = vmatpush1.bf16.msra.mxu0 0
    %161 = vmatprep.mubr.bf16.mxu0 0
    %162 = vmatmul.mubr.bf16.gmra.mrb[0].mxu0 %v127
    %v163 = vpop.f32.mrb[0].mxu0
    %v164 = vadd.f32 %v117, %v163
    %v165 = vpop.f32.mrb[0].mxu0
    %v166 = vpop.f32.mrb[0].mxu0
    %v167 = vpop.f32.mrb[0].mxu0
    %168 = vdwg.mxu0
    %v169 = vld [vmem:[#allocation5] sm:$0x3]
    %v170 = vld [vmem:[%s2] sm:$0x3]
    %v171 = vpack.c.bf16 %v169, %v169
    %v176 = vunpack.c.l.b16 %v107
    %v177 = vunpack.c.l.b16 %v108
    %v178 = vunpack.c.l.b16 %v109
    %v179 = vunpack.c.l.b16 %v110
    %v180 = vpack.c.b16 %v177, %v176
    %v181 = vpack.c.b16 %v179, %v178
    %vm184 = vcmask 261120
    %v186 = vsel %vm184, %v171, 0
    %188 = vmatprep.subr.bf16.mxu0 0
    %189 = vmatpush1.bf16.msra.mxu0 %v180
    %190 = vmatprep.subr.bf16.mxu0 0
    %191 = vmatpush1.bf16.msra.mxu0 %v181
    %192 = vmatprep.subr.bf16.mxu0 0
    %193 = vmatpush1.bf16.msra.mxu0 0
    %194 = vmatprep.subr.bf16.mxu0 0
    %195 = vmatpush1.bf16.msra.mxu0 0
    %196 = vmatprep.subr.bf16.mxu0 0
    %197 = vmatpush1.bf16.msra.mxu0 0
    %198 = vmatprep.subr.bf16.mxu0 0
    %199 = vmatpush1.bf16.msra.mxu0 0
    %200 = vmatprep.subr.bf16.mxu0 0
    %201 = vmatpush1.bf16.msra.mxu0 0
    %202 = vmatprep.subr.bf16.mxu0 0
    %203 = vmatpush1.bf16.msra.mxu0 0
    %204 = vmatprep.subr.bf16.mxu0 0
    %205 = vmatpush1.bf16.msra.mxu0 0
    %206 = vmatprep.subr.bf16.mxu0 0
    %207 = vmatpush1.bf16.msra.mxu0 0
    %208 = vmatprep.subr.bf16.mxu0 0
    %209 = vmatpush1.bf16.msra.mxu0 0
    %210 = vmatprep.subr.bf16.mxu0 0
    %211 = vmatpush1.bf16.msra.mxu0 0
    %212 = vmatprep.subr.bf16.mxu0 0
    %213 = vmatpush1.bf16.msra.mxu0 0
    %214 = vmatprep.subr.bf16.mxu0 0
    %215 = vmatpush1.bf16.msra.mxu0 0
    %216 = vmatprep.subr.bf16.mxu0 0
    %217 = vmatpush1.bf16.msra.mxu0 0
    %218 = vmatprep.subr.bf16.mxu0 0
    %219 = vmatpush1.bf16.msra.mxu0 0
    %220 = vmatprep.mubr.bf16.mxu0 0
    %221 = vmatmul.mubr.bf16.gmra.mrb[0].mxu0 %v186
    %v222 = vpop.f32.mrb[0].mxu0
    %v223 = vadd.f32 0.0, %v222
    %v224 = vpop.f32.mrb[0].mxu0
    %v225 = vpop.f32.mrb[0].mxu0
    %v226 = vpop.f32.mrb[0].mxu0
    %227 = vdwg.mxu0
    %v228 = vadd.f32 %v164, %v223
    %v229 = vmul.f32 %v228, 0.5
    %v230 = vtanh.pop %v229
    %v231 = vadd.f32 %v230, 1.0
    %v232 = vmul.f32 %v231, 0.5
    %v233 = vtanh.pop %v228
    %235 = vrot.lane.b32.xlu0 %v170, 32
    %v236 = vpop.permute.xlu0 %235
    %v238 = vmul.f32 %v232, %v236
    %240 = vrot.lane.b32.xlu0 %v233, 64
    %v241 = vpop.permute.xlu0 %240
    %v243 = vmul.f32 %v232, %v241
    %245 = vrot.lane.b32.xlu0 %v243, 32
    %v246 = vpop.permute.xlu0 %245
    %v248 = vadd.f32 %v238, %v246
    %v249 = vtanh.pop %v248
    %251 = vrot.lane.b32.xlu0 %v249, 64
    %v252 = vpop.permute.xlu0 %251
    %v254 = vmul.f32 %v232, %v252
    %256 = vrot.lane.b32.xlu0 %v254, 32
    %v257 = vpop.permute.xlu0 %256
    %vm259 = vcmask 254976
    %260 = vst.msk [vmem:[#allocation12] sm:$0x3] %vm259, %v257
    %262 = vrot.lane.b32.xlu0 %v248, 96
    %v263 = vpop.permute.xlu0 %262
    %265 = vst.msk [vmem:[#allocation14] sm:$0x3] %vm259, %v263
    %v266 = vld [vmem:[%s6] sm:$0xf]
    %v267 = vld [vmem:[%s6 + $0x4] sm:$0xf]
    %v268 = vld [vmem:[%s6 + $0x8] sm:$0xf]
    %v269 = vld [vmem:[%s6 + $0xc] sm:$0xf]
    %v270 = vld [vmem:[#allocation10] sm:$0xf]
    %v271 = vld [vmem:[#allocation10 + $0x4] sm:$0xf]
    %v272 = vld [vmem:[#allocation10 + $0x8] sm:$0xf]
    %v273 = vld [vmem:[#allocation10 + $0xc] sm:$0xf]
    %v274 = vld [vmem:[%s8] sm:$0x1]
    %v275 = vpack.c.bf16 %v254, %v254
    %v277 = vlaneseq
    %v278 = vshrl.u32 %v277, 7
    %v279 = vsub.s32 0, %v278
    %v280 = vrot.slane %v274, %v279
    %283 = vrot.lane.b32.xlu0 %v275, 32
    %v284 = vpop.permute.xlu0 %283
    %v289 = vunpack.c.l.b16 %v266
    %v290 = vunpack.c.l.b16 %v267
    %v291 = vunpack.c.l.b16 %v268
    %v292 = vunpack.c.l.b16 %v269
    %v293 = vpack.c.b16 %v290, %v289
    %v294 = vpack.c.b16 %v292, %v291
    %v298 = vsel %vm184, %v284, 0
    %300 = vmatprep.subr.bf16.mxu0 0
    %301 = vmatpush1.bf16.msra.mxu0 %v293
    %302 = vmatprep.subr.bf16.mxu0 0
    %303 = vmatpush1.bf16.msra.mxu0 %v294
    %304 = vmatprep.subr.bf16.mxu0 0
    %305 = vmatpush1.bf16.msra.mxu0 0
    %306 = vmatprep.subr.bf16.mxu0 0
    %307 = vmatpush1.bf16.msra.mxu0 0
    %308 = vmatprep.subr.bf16.mxu0 0
    %309 = vmatpush1.bf16.msra.mxu0 0
    %310 = vmatprep.subr.bf16.mxu0 0
    %311 = vmatpush1.bf16.msra.mxu0 0
    %312 = vmatprep.subr.bf16.mxu0 0
    %313 = vmatpush1.bf16.msra.mxu0 0
    %314 = vmatprep.subr.bf16.mxu0 0
    %315 = vmatpush1.bf16.msra.mxu0 0
    %316 = vmatprep.subr.bf16.mxu0 0
    %317 = vmatpush1.bf16.msra.mxu0 0
    %318 = vmatprep.subr.bf16.mxu0 0
    %319 = vmatpush1.bf16.msra.mxu0 0
    %320 = vmatprep.subr.bf16.mxu0 0
    %321 = vmatpush1.bf16.msra.mxu0 0
    %322 = vmatprep.subr.bf16.mxu0 0
    %323 = vmatpush1.bf16.msra.mxu0 0
    %324 = vmatprep.subr.bf16.mxu0 0
    %325 = vmatpush1.bf16.msra.mxu0 0
    %326 = vmatprep.subr.bf16.mxu0 0
    %327 = vmatpush1.bf16.msra.mxu0 0
    %328 = vmatprep.subr.bf16.mxu0 0
    %329 = vmatpush1.bf16.msra.mxu0 0
    %330 = vmatprep.subr.bf16.mxu0 0
    %331 = vmatpush1.bf16.msra.mxu0 0
    %332 = vmatprep.mubr.bf16.mxu0 0
    %333 = vmatmul.mubr.bf16.gmra.mrb[0].mxu0 %v298
    %v334 = vpop.f32.mrb[0].mxu0
    %v335 = vadd.f32 %v280, %v334
    %v336 = vpop.f32.mrb[0].mxu0
    %v337 = vpop.f32.mrb[0].mxu0
    %v338 = vpop.f32.mrb[0].mxu0
    %339 = vdwg.mxu0
    %s340 = scalar_lea.vmem [#allocation5], 2
    %v341 = vld [vmem:[%s340] sm:$0x3]
    %s342 = scalar_lea.vmem %s2, 2
    %v343 = vld [vmem:[%s342] sm:$0x3]
    %v344 = vpack.c.bf16 %v341, %v341
    %v349 = vunpack.c.l.b16 %v270
    %v350 = vunpack.c.l.b16 %v271
    %v351 = vunpack.c.l.b16 %v272
    %v352 = vunpack.c.l.b16 %v273
    %v353 = vpack.c.b16 %v350, %v349
    %v354 = vpack.c.b16 %v352, %v351
    %v358 = vsel %vm184, %v344, 0
    %360 = vmatprep.subr.bf16.mxu0 0
    %361 = vmatpush1.bf16.msra.mxu0 %v353
    %362 = vmatprep.subr.bf16.mxu0 0
    %363 = vmatpush1.bf16.msra.mxu0 %v354
    %364 = vmatprep.subr.bf16.mxu0 0
    %365 = vmatpush1.bf16.msra.mxu0 0
    %366 = vmatprep.subr.bf16.mxu0 0
    %367 = vmatpush1.bf16.msra.mxu0 0
    %368 = vmatprep.subr.bf16.mxu0 0
    %369 = vmatpush1.bf16.msra.mxu0 0
    %370 = vmatprep.subr.bf16.mxu0 0
    %371 = vmatpush1.bf16.msra.mxu0 0
    %372 = vmatprep.subr.bf16.mxu0 0
    %373 = vmatpush1.bf16.msra.mxu0 0
    %374 = vmatprep.subr.bf16.mxu0 0
    %375 = vmatpush1.bf16.msra.mxu0 0
    %376 = vmatprep.subr.bf16.mxu0 0
    %377 = vmatpush1.bf16.msra.mxu0 0
    %378 = vmatprep.subr.bf16.mxu0 0
    %379 = vmatpush1.bf16.msra.mxu0 0
    %380 = vmatprep.subr.bf16.mxu0 0
    %381 = vmatpush1.bf16.msra.mxu0 0
    %382 = vmatprep.subr.bf16.mxu0 0
    %383 = vmatpush1.bf16.msra.mxu0 0
    %384 = vmatprep.subr.bf16.mxu0 0
    %385 = vmatpush1.bf16.msra.mxu0 0
    %386 = vmatprep.subr.bf16.mxu0 0
    %387 = vmatpush1.bf16.msra.mxu0 0
    %388 = vmatprep.subr.bf16.mxu0 0
    %389 = vmatpush1.bf16.msra.mxu0 0
    %390 = vmatprep.subr.bf16.mxu0 0
    %391 = vmatpush1.bf16.msra.mxu0 0
    %392 = vmatprep.mubr.bf16.mxu0 0
    %393 = vmatmul.mubr.bf16.gmra.mrb[0].mxu0 %v358
    %v394 = vpop.f32.mrb[0].mxu0
    %v395 = vadd.f32 0.0, %v394
    %v396 = vpop.f32.mrb[0].mxu0
    %v397 = vpop.f32.mrb[0].mxu0
    %v398 = vpop.f32.mrb[0].mxu0
    %399 = vdwg.mxu0
    %v400 = vadd.f32 %v335, %v395
    %v401 = vmul.f32 %v400, 0.5
    %v402 = vtanh.pop %v401
    %v403 = vadd.f32 %v402, 1.0
    %v404 = vmul.f32 %v403, 0.5
    %v405 = vtanh.pop %v400
    %407 = vrot.lane.b32.xlu0 %v343, 32
    %v408 = vpop.permute.xlu0 %407
    %v410 = vmul.f32 %v404, %v408
    %412 = vrot.lane.b32.xlu0 %v405, 64
    %v413 = vpop.permute.xlu0 %412
    %v415 = vmul.f32 %v404, %v413
    %417 = vrot.lane.b32.xlu0 %v415, 32
    %v418 = vpop.permute.xlu0 %417
    %v420 = vadd.f32 %v410, %v418
    %v421 = vtanh.pop %v420
    %423 = vrot.lane.b32.xlu0 %v421, 64
    %v424 = vpop.permute.xlu0 %423
    %v426 = vmul.f32 %v404, %v424
    %428 = vrot.lane.b32.xlu0 %v426, 32
    %v429 = vpop.permute.xlu0 %428
    %s431 = scalar_lea.vmem [#allocation12], 2
    %432 = vst.msk [vmem:[%s431] sm:$0x3] %vm259, %v429
    %434 = vrot.lane.b32.xlu0 %v420, 96
    %v435 = vpop.permute.xlu0 %434
    %s437 = scalar_lea.vmem [#allocation14], 2
    %438 = vst.msk [vmem:[%s437] sm:$0x3] %vm259, %v435
    %439 = vst.msk [vmem:[#allocation11] sm:$0x3] %vm259, %v429
    // Predicated region
    $region58: #{tpu_custom_call.1} parent=1 // pred_check
      _
    $region59: #{tpu_custom_call.1} parent=1 // pred_check_branch
      %441 = sbr.rel (0) target = $region61
    $region60: #{tpu_custom_call.1} parent=1 // pred_region
      %s443 = ssub.s32 32, 32
      %444 = vsyncadd [#allocation4], %s443
      %s446 = sshll.u32 [#allocation11], 4
      %s447 = int_to_ptr.vmem [resolvable:$true] %s446
      %449 = dma.vmem_to_hbm [thread:$0]  %s447, 32, %s9, [#allocation4]
    $region61: #{tpu_custom_call.1} parent=1 // pred_fallthru
      _
    // Predicated region
    $region62: #{tpu_custom_call.1} parent=1 // pred_check
      _
    $region63: #{tpu_custom_call.1} parent=1 // pred_check_branch
      %451 = sbr.rel (0) target = $region65
    $region64: #{tpu_custom_call.1} parent=1 // pred_region
      %s453 = ssub.s32 64, 64
      %454 = vsyncadd [#allocation13], %s453
      %s455 = sshll.u32 [#allocation12], 4
      %s456 = int_to_ptr.vmem [resolvable:$true] %s455
      %461 = dma.vmem_to_hbm [thread:$0]  %s456, 64, %s10, [#allocation13], 32, 32, 2
    $region65: #{tpu_custom_call.1} parent=1 // pred_fallthru
      _
    // Predicated region
    $region66: #{tpu_custom_call.1} parent=1 // pred_check
      _
    $region67: #{tpu_custom_call.1} parent=1 // pred_check_branch
      %463 = sbr.rel (0) target = $region69
    $region68: #{tpu_custom_call.1} parent=1 // pred_region
      %s465 = ssub.s32 64, 64
      %466 = vsyncadd [#allocation13], %s465
      %s467 = sshll.u32 [#allocation14], 4
      %s468 = int_to_ptr.vmem [resolvable:$true] %s467
      %473 = dma.vmem_to_hbm [thread:$0]  %s468, 64, %s11, [#allocation13], 32, 32, 2
    $region69: #{tpu_custom_call.1} parent=1 // pred_fallthru
      _
    // Predicated region
    $region70: #{tpu_custom_call.1} parent=1 // pred_check
      _
    $region71: #{tpu_custom_call.1} parent=1 // pred_check_branch
      %475 = sbr.rel (0) target = $region73
    $region72: #{tpu_custom_call.1} parent=1 // pred_region
      %476 = dma.done [#allocation4], 32
    $region73: #{tpu_custom_call.1} parent=1 // pred_fallthru
      _
    // Predicated region
    $region74: #{tpu_custom_call.1} parent=1 // pred_check
      _
    $region75: #{tpu_custom_call.1} parent=1 // pred_check_branch
      %478 = sbr.rel (0) target = $region77
    $region76: #{tpu_custom_call.1} parent=1 // pred_region
      %479 = dma.done [#allocation13], 64
    $region77: #{tpu_custom_call.1} parent=1 // pred_fallthru
      _
    // Predicated region
    $region78: #{tpu_custom_call.1} parent=1 // pred_check
      _
    $region79: #{tpu_custom_call.1} parent=1 // pred_check_branch
      %481 = sbr.rel (0) target = $region81
    $region80: #{tpu_custom_call.1} parent=1 // pred_region
      %482 = dma.done [#allocation13], 64
    $region81: #{tpu_custom_call.1} parent=1 // pred_fallthru
      _
    %483 = vsyncpa [#allocation3], 1
    %484 = vsyncpa [#allocation6], 1
    %485 = vsyncpa [#allocation9], 1
    %486 = vsyncpa [#allocation4], 1
    %487 = vsyncpa [#allocation13], 1

</llo_original>
